<compile_context>
chip_gen: v6e
topology: v6e:2x2x1
jax: 0.10.0
libtpu: 0.0.40
codegen_flags: <defaults>
</compile_context>

<pallas_src>
import jax
import jax.numpy as jnp
from jax.experimental import pallas as pl
from jax.experimental.pallas import tpu as pltpu


_COMPUTE_DTYPE = jnp.bfloat16
_WS_VMEM_BUDGET = 40 * 1024 * 1024   # keep well under v7x's 64 MiB physical VMEM


def _round_up(x, m):
    return ((x + m - 1) // m) * m


def _pick_tile(total, max_tile, align=128):
    """Largest multiple of `align` <= max_tile that divides `total`.

    `total` is already a multiple of `align`."""
    t = min(total, max(align, (max_tile // align) * align))
    while total % t:
        t -= align
    return t


# ----------------------------- kernels --------------------------------------


def _expert_kernel_ws(x_ref, w_ref, b_ref, o_ref):
    # Weight-stationary: one full-depth MXU pass; the (Kp, TN) weight block is
    # resident across the inner (batch) grid axis.  f32 epilogue (v5e-safe).
    y = jnp.dot(x_ref[...], w_ref[...], preferred_element_type=jnp.float32)
    o_ref[...] = jnp.maximum(y + b_ref[...], 0.0).astype(o_ref.dtype)


def _expert_kernel_ks(x_ref, w_ref, b_ref, o_ref):
    # K-streamed fallback (W larger than the VMEM budget): accumulate directly
    # into the resident f32 output block -- no extra scratch accumulator.
    k = pl.program_id(2)

    @pl.when(k == 0)
    def _():
        o_ref[...] = jnp.zeros_like(o_ref)

    o_ref[...] += jnp.dot(x_ref[...], w_ref[...],
                          preferred_element_type=jnp.float32)

    @pl.when(k == pl.num_programs(2) - 1)
    def _():
        o_ref[...] = jnp.maximum(o_ref[...] + b_ref[...], 0.0)


# ----------------------------- wrappers --------------------------------------


def prepare_expert_params(w, b, compute_dtype=_COMPUTE_DTYPE):
    """One-time parameter prep (hoisted out of the per-call path).

    w: [d_latent, d_input] (PyTorch Linear layout), b: [d_latent].
    Returns (w_t [Kp, Np] compute_dtype, b_p [1, Np] f32, d_input, d_latent)."""
    d_latent, d_input = w.shape
    Kp = _round_up(d_input, 128)
    Np = _round_up(d_latent, 128)
    w_t = (jnp.zeros((Kp, Np), compute_dtype)
           .at[:d_input, :d_latent].set(w.T.astype(compute_dtype)))
    b_p = (jnp.zeros((1, Np), jnp.float32)
           .at[0, :d_latent].set(b.astype(jnp.float32)))
    return w_t, b_p, d_input, d_latent


def expert_forward(x, w_t, b_p, d_input, d_latent, *,
                   tm_max=256, tn_max=512, tk_max=512, force_k_stream=False):
    """relu(x @ W.T + b) with pre-prepared params.  x: [B, d_input] -> [B, d_latent] f32."""
    B = x.shape[0]
    Kp, Np = w_t.shape
    cdt = w_t.dtype
    cbytes = jnp.dtype(cdt).itemsize
    out_dtype = jnp.float32

    # Batch tiling (sublane-aligned).
    M8 = _round_up(max(B, 1), 8)
    TM = min(M8, tm_max)
    Mp = _round_up(M8, TM)
    n_m = Mp // TM

    # Output-column tiling (lane-dense, multiple of 128).
    TN = _pick_tile(Np, tn_max)
    n_n = Np // TN

    # Per-call activation padding + cast fused into one set (compute dtype DMA'd).
    xp = jnp.zeros((Mp, Kp), cdt).at[:B, :d_input].set(x.astype(cdt))

    # Double-buffered footprint of the weight-stationary layout.
    ws_footprint = 2 * (TM * Kp * cbytes      # x tile
                        + Kp * TN * cbytes    # full-depth W tile
                        + TN * 4              # bias tile
                        + TM * TN * 4)        # output tile
    use_ws = (not force_k_stream) and (ws_footprint <= _WS_VMEM_BUDGET)

    if use_ws:
        # N outer, M inner: W block index is constant across the inner batch
        # sweep, so each weight block is DMA'd exactly once.
        grid = (n_n, n_m)
        in_specs = [
            pl.BlockSpec((TM, Kp), lambda j, i: (i, 0)),   # x tile
            pl.BlockSpec((Kp, TN), lambda j, i: (0, j)),   # W tile (stationary per j)
            pl.BlockSpec((1, TN), lambda j, i: (0, j)),    # bias tile
        ]
        out_specs = pl.BlockSpec((TM, TN), lambda j, i: (i, j))
        semantics = ("parallel", "parallel")
        kernel = _expert_kernel_ws
        footprint = ws_footprint
        bytes_accessed = (n_n * Mp * Kp * cbytes   # x re-streamed once per N tile
                          + Kp * Np * cbytes       # W streamed exactly once
                          + Np * 4                 # bias
                          + Mp * Np * 4)           # output write
    else:
        TK = _pick_tile(Kp, tk_max)
        n_k = Kp // TK
        grid = (n_m, n_n, n_k)
        in_specs = [
            pl.BlockSpec((TM, TK), lambda i, j, k: (i, k)),
            pl.BlockSpec((TK, TN), lambda i, j, k: (k, j)),
            pl.BlockSpec((1, TN), lambda i, j, k: (0, j)),
        ]
        out_specs = pl.BlockSpec((TM, TN), lambda i, j, k: (i, j))
        semantics = ("parallel", "parallel", "arbitrary")
        kernel = _expert_kernel_ks
        footprint = 2 * (TM * TK * cbytes + TK * TN * cbytes + TN * 4 + TM * TN * 4)
        bytes_accessed = (n_n * Mp * Kp * cbytes
                          + n_m * Kp * Np * cbytes  # W re-streamed per M tile
                          + n_m * Np * 4
                          + Mp * Np * 4)

    vmem_limit = int(min(64 * 1024 * 1024, max(footprint + (4 << 20), 16 << 20)))
    flops = 2 * Mp * Kp * Np

    out = pl.pallas_call(
        kernel,
        out_shape=jax.ShapeDtypeStruct((Mp, Np), out_dtype),
        grid_spec=pltpu.PrefetchScalarGridSpec(
            num_scalar_prefetch=0,
            grid=grid,
            in_specs=in_specs,
            out_specs=out_specs,
        ),
        compiler_params=pltpu.CompilerParams(
            dimension_semantics=semantics,
            vmem_limit_bytes=vmem_limit,
        ),
        cost_estimate=pl.CostEstimate(
            flops=flops, transcendentals=0, bytes_accessed=bytes_accessed),
    )(xp, w_t, b_p)

    return out[:B, :d_latent]


def init_expert_params(key, d_input, d_latent):
    # Deterministic synthetic init (stand-in for init_linear): uniform
    # +/- 1/sqrt(d_input), matching nn.Linear's default fan-in scaling.
    kw, kb = jax.random.split(key)
    bound = 1.0 / (d_input ** 0.5)
    w = jax.random.uniform(kw, (d_latent, d_input), jnp.float32, -bound, bound)
    b = jax.random.uniform(kb, (d_latent,), jnp.float32, -bound, bound)
    return w, b


if __name__ == "__main__":
    key = jax.random.PRNGKey(0)
    k_x, k_p, k_x2, k_p2 = jax.random.split(key, 4)

    # --- main check: small Expert, weight-stationary path --------------------
    B, d_input, d_latent = 8, 32, 64
    x = jax.random.normal(k_x, (B, d_input), jnp.float32)
    w, b = init_expert_params(k_p, d_input, d_latent)

    w_t, b_p, di, dl = prepare_expert_params(w, b)      # one-time param prep
    out = expert_forward(x, w_t, b_p, di, dl)
    out = jax.block_until_ready(out)

    ref_f32 = jnp.maximum(x @ w.T + b, 0.0)
    ref_bf16 = jnp.maximum(
        jnp.dot(x.astype(jnp.bfloat16), w.T.astype(jnp.bfloat16),
                preferred_element_type=jnp.float32) + b, 0.0)

    assert out.shape == (B, d_latent)
    assert out.dtype == jnp.float32
    assert jnp.allclose(out, ref_bf16, atol=2e-3, rtol=2e-3)
    assert jnp.allclose(out, ref_f32, atol=5e-2, rtol=5e-2)

    # --- secondary check: K-streamed fallback path (multi-tile N and K) ------
    B2, d_in2, d_lat2 = 16, 256, 192
    x2 = jax.random.normal(k_x2, (B2, d_in2), jnp.float32)
    w2, b2 = init_expert_params(k_p2, d_in2, d_lat2)
    w2_t, b2_p, di2, dl2 = prepare_expert_params(w2, b2)
    out2 = expert_forward(x2, w2_t, b2_p, di2, dl2,
                          force_k_stream=True, tk_max=128, tn_max=128)
    out2 = jax.block_until_ready(out2)
    ref2 = jnp.maximum(
        jnp.dot(x2.astype(jnp.bfloat16), w2.T.astype(jnp.bfloat16),
                preferred_element_type=jnp.float32) + b2, 0.0)
    assert out2.shape == (B2, d_lat2)
    assert jnp.allclose(out2, ref2, atol=1e-2, rtol=1e-2)

    print("KERNEL_OK")
</pallas_src>

<mosaic_0001>
module attributes {stable_mosaic.version = 11 : i64} {
  func.func @_expert_kernel_ws(%arg0: i32, %arg1: i32, %arg2: memref<8x128xbf16, #tpu.memory_space<vmem>>, %arg3: memref<128x128xbf16, #tpu.memory_space<vmem>>, %arg4: memref<1x128xf32, #tpu.memory_space<vmem>>, %arg5: memref<8x128xf32, #tpu.memory_space<vmem>>) attributes {dimension_semantics = [#tpu.dimension_semantics<parallel>, #tpu.dimension_semantics<parallel>], iteration_bounds = array<i64: 1, 1>, scalar_prefetch = 0 : i64, scratch_operands = 0 : i64, tpu.core_type = #tpu.core_type<tc>, window_params = [{transform_indices = @transform_0, window_bounds = array<i64: 8, 128>}, {transform_indices = @transform_1, window_bounds = array<i64: 128, 128>}, {transform_indices = @transform_2, window_bounds = array<i64: 1, 128>}, {transform_indices = @transform_3, window_bounds = array<i64: 8, 128>}]} {
    %c0 = arith.constant 0 : index
    %c0_0 = arith.constant 0 : index
    %0 = vector.load %arg2[%c0, %c0_0] : memref<8x128xbf16, #tpu.memory_space<vmem>>, vector<8x128xbf16>
    %c0_1 = arith.constant 0 : index
    %c0_2 = arith.constant 0 : index
    %1 = vector.load %arg3[%c0_1, %c0_2] : memref<128x128xbf16, #tpu.memory_space<vmem>>, vector<128x128xbf16>
    %cst = arith.constant dense<0.000000e+00> : vector<8x128xf32>
    %2 = tpu.matmul %0, %1, %cst {dimension_numbers = #tpu.dot_dimension_numbers<[1], [0], [0], [1], [0, 0, 1, 1], [], []>} : vector<8x128xbf16>, vector<128x128xbf16>, vector<8x128xf32> -> vector<8x128xf32>
    %c0_3 = arith.constant 0 : index
    %c0_4 = arith.constant 0 : index
    %3 = vector.load %arg4[%c0_3, %c0_4] : memref<1x128xf32, #tpu.memory_space<vmem>>, vector<1x128xf32>
    %4 = vector.broadcast %3 : vector<1x128xf32> to vector<8x128xf32>
    %5 = arith.addf %2, %4 : vector<8x128xf32>
    %cst_5 = arith.constant 0.000000e+00 : f32
    %6 = vector.broadcast %cst_5 : f32 to vector<8x128xf32>
    %7 = arith.maximumf %5, %6 : vector<8x128xf32>
    %c0_6 = arith.constant 0 : index
    %c0_7 = arith.constant 0 : index
    %8 = vector.load %arg5[%c0_6, %c0_7] : memref<8x128xf32, #tpu.memory_space<vmem>>, vector<8x128xf32>
    tpu.vector_store %arg5[%c0_6, %c0_7], %7 {strides = array<i32>} : memref<8x128xf32, #tpu.memory_space<vmem>>, vector<8x128xf32>,
    return
  }
  func.func @transform_0(%arg0: i32, %arg1: i32) -> (i32, i32) {
    %c0_i32 = arith.constant 0 : i32
    %c0_i32_0 = arith.constant 0 : i32
    return %arg1, %c0_i32 : i32, i32
  }
  func.func @transform_1(%arg0: i32, %arg1: i32) -> (i32, i32) {
    %c0_i32 = arith.constant 0 : i32
    %c0_i32_0 = arith.constant 0 : i32
    return %c0_i32, %arg0 : i32, i32
  }
  func.func @transform_2(%arg0: i32, %arg1: i32) -> (i32, i32) {
    %c0_i32 = arith.constant 0 : i32
    %c0_i32_0 = arith.constant 0 : i32
    return %c0_i32, %arg0 : i32, i32
  }
  func.func @transform_3(%arg0: i32, %arg1: i32) -> (i32, i32) {
    %c0_i32 = arith.constant 0 : i32
    return %arg1, %arg0 : i32, i32
  }
}

</mosaic_0001>

<llo_original>
// kernel: tpu_custom_call.1
$region0: #{tpu_custom_call.1}
  #allocation0 [shape = 'u32[]', space=smem, size = 0x4, offset = 0x4, fixed_abs, tag = 'smem constant byte address 0x4 - core index']
  #allocation1 [shape = 'u32[144,128]{1,0:T(1,128)}', space=vmem, size = 0x12000, scoped, tag = 'internal scratch']
  %s0 = inlined_call_operand.hbm [shape: bf16[8,128], index: 0, kind: input, shape index: {}]
  %s1 = inlined_call_operand.hbm [shape: bf16[128,128], index: 1, kind: input, shape index: {}]
  %s2 = inlined_call_operand.vmem [shape: f32[1,128], index: 2, kind: input, shape index: {}]
  %s3 = inlined_call_operand.hbm [shape: f32[8,128], index: 3, kind: output, shape index: {}]
  %s4 = sld [smem:[#allocation0]]
  $region30: #{tpu_custom_call.1} parent=0
    _
  %s6 = ssub.s32 1, %s4
  %s7 = scalar_select 0, %s6, %s4
  $region1: #{tpu_custom_call.1} parent=0
    #allocation2 [shape = 'u8[2048]{0}', space=vmem, size = 0x800, scoped, tag = 'input window, operand 0, single buffered']
    #allocation3 [shape = 's32[1]{0}', space=sflag, size = 0x4, scoped, tag = 'scoped memory for tpu_custom_call.1']
    #allocation4 [shape = 's32[1]{0}', space=sflag, size = 0x4, scoped, tag = 'scoped memory for tpu_custom_call.1']
    #allocation5 [shape = 'u8[32768]{0}', space=vmem, size = 0x8000, scoped, tag = 'input window, operand 1, single buffered']
    #allocation6 [shape = 's32[1]{0}', space=sflag, size = 0x4, scoped, tag = 'scoped memory for tpu_custom_call.1']
    #allocation7 [shape = 'u8[4096]{0}', space=vmem, size = 0x1000, scoped, tag = 'output window, operand 0, single buffered']
    %8 = vsyncpa [#allocation3], 0
    %9 = vsyncpa [#allocation6], 0
    %10 = vsyncpa [#allocation4], 0
    // Predicated region
    $region2: #{tpu_custom_call.1} parent=1 // pred_check
      _
    $region3: #{tpu_custom_call.1} parent=1 // pred_check_branch
      %12 = sbr.rel (0) target = $region5
    $region4: #{tpu_custom_call.1} parent=1 // pred_region
      %s14 = ssub.s32 64, 64
      %15 = vsyncadd [#allocation3], %s14
      %s17 = sshll.u32 [#allocation2], 4
      %s18 = int_to_ptr.vmem [resolvable:$true] %s17
      %20 = dma.hbm_to_vmem [thread:$0]  %s0, 64, %s18, [#allocation3]
    $region5: #{tpu_custom_call.1} parent=1 // pred_fallthru
      _
    // Predicated region
    $region6: #{tpu_custom_call.1} parent=1 // pred_check
      _
    $region7: #{tpu_custom_call.1} parent=1 // pred_check_branch
      %22 = sbr.rel (0) target = $region9
    $region8: #{tpu_custom_call.1} parent=1 // pred_region
      %s24 = ssub.s32 1024, 1024
      %25 = vsyncadd [#allocation6], %s24
      %s26 = sshll.u32 [#allocation5], 4
      %s27 = int_to_ptr.vmem [resolvable:$true] %s26
      %32 = dma.hbm_to_vmem [thread:$0]  %s1, 1024, %s27, [#allocation6], 64, 64, 4
    $region9: #{tpu_custom_call.1} parent=1 // pred_fallthru
      _
    // Predicated region
    $region10: #{tpu_custom_call.1} parent=1 // pred_check
      _
    $region11: #{tpu_custom_call.1} parent=1 // pred_check_branch
      %34 = sbr.rel (0) target = $region13
    $region12: #{tpu_custom_call.1} parent=1 // pred_region
      _
    $region13: #{tpu_custom_call.1} parent=1 // pred_fallthru
      _
    // Predicated region
    $region14: #{tpu_custom_call.1} parent=1 // pred_check
      _
    $region15: #{tpu_custom_call.1} parent=1 // pred_check_branch
      %36 = sbr.rel (0) target = $region17
    $region16: #{tpu_custom_call.1} parent=1 // pred_region
      %37 = dma.done [#allocation3], 64
    $region17: #{tpu_custom_call.1} parent=1 // pred_fallthru
      _
    // Predicated region
    $region18: #{tpu_custom_call.1} parent=1 // pred_check
      _
    $region19: #{tpu_custom_call.1} parent=1 // pred_check_branch
      %39 = sbr.rel (0) target = $region21
    $region20: #{tpu_custom_call.1} parent=1 // pred_region
      %40 = dma.done [#allocation6], 1024
    $region21: #{tpu_custom_call.1} parent=1 // pred_fallthru
      _
    %v42 = vld [vmem:[#allocation2] sm:$0xf]
    %v43 = vld [vmem:[#allocation5] sm:$0xf]
    %v44 = vld [vmem:[#allocation5 + $0x4] sm:$0xf]
    %v45 = vld [vmem:[#allocation5 + $0x8] sm:$0xf]
    %v46 = vld [vmem:[#allocation5 + $0xc] sm:$0xf]
    %v47 = vld [vmem:[#allocation5 + $0x10] sm:$0xf]
    %v48 = vld [vmem:[#allocation5 + $0x14] sm:$0xf]
    %v49 = vld [vmem:[#allocation5 + $0x18] sm:$0xf]
    %v50 = vld [vmem:[#allocation5 + $0x1c] sm:$0xf]
    %v51 = vld [vmem:[#allocation5 + $0x20] sm:$0xf]
    %v52 = vld [vmem:[#allocation5 + $0x24] sm:$0xf]
    %v53 = vld [vmem:[#allocation5 + $0x28] sm:$0xf]
    %v54 = vld [vmem:[#allocation5 + $0x2c] sm:$0xf]
    %v55 = vld [vmem:[#allocation5 + $0x30] sm:$0xf]
    %v56 = vld [vmem:[#allocation5 + $0x34] sm:$0xf]
    %v57 = vld [vmem:[#allocation5 + $0x38] sm:$0xf]
    %v58 = vld [vmem:[#allocation5 + $0x3c] sm:$0xf]
    %v59 = vld [vmem:[%s2] sm:$0x1]
    %v61 = vlaneseq
    %v62 = vshrl.u32 %v61, 7
    %v63 = vsub.s32 0, %v62
    %v64 = vrot.slane %v59, %v63
    %v82 = vunpack.c.l.b16 %v43
    %v83 = vunpack.c.l.b16 %v44
    %v84 = vunpack.c.l.b16 %v45
    %v85 = vunpack.c.l.b16 %v46
    %v86 = vunpack.c.l.b16 %v47
    %v87 = vunpack.c.l.b16 %v48
    %v88 = vunpack.c.l.b16 %v49
    %v89 = vunpack.c.l.b16 %v50
    %v90 = vunpack.c.l.b16 %v51
    %v91 = vunpack.c.l.b16 %v52
    %v92 = vunpack.c.l.b16 %v53
    %v93 = vunpack.c.l.b16 %v54
    %v94 = vunpack.c.l.b16 %v55
    %v95 = vunpack.c.l.b16 %v56
    %v96 = vunpack.c.l.b16 %v57
    %v97 = vunpack.c.l.b16 %v58
    %v98 = vpack.c.b16 %v83, %v82
    %v99 = vpack.c.b16 %v85, %v84
    %v100 = vpack.c.b16 %v87, %v86
    %v101 = vpack.c.b16 %v89, %v88
    %v102 = vpack.c.b16 %v91, %v90
    %v103 = vpack.c.b16 %v93, %v92
    %v104 = vpack.c.b16 %v95, %v94
    %v105 = vpack.c.b16 %v97, %v96
    %114 = vmatprep.subr.bf16.mxu0 0
    %115 = vmatpush1.bf16.msra.mxu0 %v105
    %116 = vmatprep.subr.bf16.mxu0 0
    %117 = vmatpush1.bf16.msra.mxu0 %v104
    %118 = vmatprep.subr.bf16.mxu0 0
    %119 = vmatpush1.bf16.msra.mxu0 %v103
    %120 = vmatprep.subr.bf16.mxu0 0
    %121 = vmatpush1.bf16.msra.mxu0 %v102
    %122 = vmatprep.subr.bf16.mxu0 0
    %123 = vmatpush1.bf16.msra.mxu0 %v101
    %124 = vmatprep.subr.bf16.mxu0 0
    %125 = vmatpush1.bf16.msra.mxu0 %v100
    %126 = vmatprep.subr.bf16.mxu0 0
    %127 = vmatpush1.bf16.msra.mxu0 %v99
    %128 = vmatprep.subr.bf16.mxu0 0
    %129 = vmatpush1.bf16.msra.mxu0 %v98
    %130 = vmatprep.subr.bf16.mxu0 0
    %131 = vmatpush2.bf16.msra.mxu0 0
    %132 = vmatprep.subr.bf16.mxu0 0
    %133 = vmatpush2.bf16.msra.mxu0 0
    %134 = vmatprep.subr.bf16.mxu0 0
    %135 = vmatpush2.bf16.msra.mxu0 0
    %136 = vmatprep.subr.bf16.mxu0 0
    %137 = vmatpush2.bf16.msra.mxu0 0
    %138 = vmatprep.subr.bf16.mxu0 0
    %139 = vmatpush2.bf16.msra.mxu0 0
    %140 = vmatprep.subr.bf16.mxu0 0
    %141 = vmatpush2.bf16.msra.mxu0 0
    %142 = vmatprep.subr.bf16.mxu0 0
    %143 = vmatpush2.bf16.msra.mxu0 0
    %144 = vmatprep.subr.bf16.mxu0 0
    %145 = vmatpush2.bf16.msra.mxu0 0
    %146 = vmatprep.mubr.bf16.mxu0 0
    %147 = vmatmul.mubr.bf16.gmra.mxu0 %v42
    %v148 = vpop.f32.mrf.mxu0
    %v149 = vadd.f32 %v64, %v148
    %v150 = vpop.f32.mrf.mxu0
    %v151 = vpop.f32.mrf.mxu0
    %v152 = vpop.f32.mrf.mxu0
    %153 = vdwg.mxu0
    %v154 = vmax.f32 %v149, 0.0
    %155 = vst [vmem:[#allocation7] sm:$0xff] %v154
    // Predicated region
    $region22: #{tpu_custom_call.1} parent=1 // pred_check
      _
    $region23: #{tpu_custom_call.1} parent=1 // pred_check_branch
      %157 = sbr.rel (0) target = $region25
    $region24: #{tpu_custom_call.1} parent=1 // pred_region
      %s159 = ssub.s32 128, 128
      %160 = vsyncadd [#allocation4], %s159
      %s162 = sshll.u32 [#allocation7], 4
      %s163 = int_to_ptr.vmem [resolvable:$true] %s162
      %165 = dma.vmem_to_hbm [thread:$0]  %s163, 128, %s3, [#allocation4]
    $region25: #{tpu_custom_call.1} parent=1 // pred_fallthru
      _
    // Predicated region
    $region26: #{tpu_custom_call.1} parent=1 // pred_check
      _
    $region27: #{tpu_custom_call.1} parent=1 // pred_check_branch
      %167 = sbr.rel (0) target = $region29
    $region28: #{tpu_custom_call.1} parent=1 // pred_region
      %168 = dma.done [#allocation4], 128
    $region29: #{tpu_custom_call.1} parent=1 // pred_fallthru
      _
    %169 = vsyncpa [#allocation3], 1
    %170 = vsyncpa [#allocation6], 1
    %171 = vsyncpa [#allocation4], 1

</llo_original>
